<compile_context>
chip_gen: v7x
topology: tpu7x:2x2x1
jax: 0.10.0
libtpu: 0.0.40
codegen_flags: <defaults>
</compile_context>

<pallas_src>
import jax
import jax.numpy as jnp
from jax.experimental import pallas as pl
from jax.experimental.pallas import tpu as pltpu


def _round_up(x, m):
    return (x + m - 1) // m * m


def span_attention_kernel(q_ref, mask_ref, w_ref, b_ref, out_ref):
    # q_ref:    [TB, Lp, D]  native dtype (VMEM, streamed per batch tile)
    # mask_ref: [TB, Lp]     int8 (VMEM), nonzero => pad token
    # w_ref:    [1, D]       float32 (VMEM, resident across the grid)
    # b_ref:    [1]          float32 (SMEM scalar)
    # out_ref:  [TB, Lp]     output dtype (VMEM)
    q = q_ref[...].astype(jnp.float32)                       # (TB, Lp, D)
    w = w_ref[...].astype(jnp.float32).reshape(1, 1, -1)     # (1, 1, D)

    # Linear(D -> 1): VALU multiply + XLU reduction over the lane (D) axis.
    scores = jnp.sum(q * w, axis=-1) + b_ref[0]              # (TB, Lp)

    # masked_fill_(q_mask, -inf).  Padded L columns were marked as pad by the
    # wrapper so they never contribute.  (A fully padded row yields NaN, same
    # as PyTorch's masked_fill + softmax.)
    pad = mask_ref[...].astype(jnp.float32) != 0.0
    scores = jnp.where(pad, -jnp.inf, scores)

    # Numerically stable softmax over the sequence axis.
    m = jnp.max(scores, axis=-1, keepdims=True)
    e = jnp.exp(scores - m)
    s = jnp.sum(e, axis=-1, keepdims=True)
    out_ref[...] = (e * pl.reciprocal(s, approx=False)).astype(out_ref.dtype)


def span_attention(q, q_mask, weight, bias, *, q_tile_bytes=4 * 1024 * 1024):
    """q: [B, L, D] float, q_mask: [B, L] bool (True == pad),
    weight: [1, D] (nn.Linear weight), bias: [1].  Returns [B, L] scores."""
    B, L, D = q.shape

    # Lane-dense output: pad L up to a multiple of 128.
    Lp = _round_up(max(L, 1), 128)

    # Batch tile: largest multiple of 8 whose q tile is ~q_tile_bytes so
    # double-buffering (plus in-kernel f32 temporaries) fits in 32 MiB scoped
    # VMEM on every generation (v5e / v6e / v7x, incl. v7x's 64 MiB physical).
    bytes_per_row = Lp * D * q.dtype.itemsize
    tb = max(1, q_tile_bytes // bytes_per_row)
    tb = min(tb, _round_up(B, 8))
    TB = max(8, (tb // 8) * 8)
    Bp = _round_up(B, TB)

    # Pad inputs.  q: zeros.  mask: padded L columns -> pad (1) so they never
    # enter the softmax; padded batch rows -> valid (0) so they stay finite
    # (they are sliced off below).
    q_p = jnp.pad(q, ((0, Bp - B), (0, Lp - L), (0, 0)))
    mask_p = jnp.pad(q_mask.astype(jnp.int8), ((0, Bp - B), (0, Lp - L)),
                     constant_values=((0, 0), (0, 1)))
    w = weight.astype(jnp.float32)              # (1, D), stays resident in VMEM
    b = bias.reshape(1).astype(jnp.float32)     # (1,) scalar -> SMEM

    out_p = pl.pallas_call(
        span_attention_kernel,
        out_shape=jax.ShapeDtypeStruct((Bp, Lp), q.dtype),
        grid=(Bp // TB,),
        in_specs=[
            pl.BlockSpec((TB, Lp, D), lambda i: (i, 0, 0)),      # q (streamed)
            pl.BlockSpec((TB, Lp), lambda i: (i, 0)),             # mask (int8)
            pl.BlockSpec((1, D), lambda i: (0, 0)),               # weight
            pl.BlockSpec(memory_space=pltpu.MemorySpace.SMEM),    # bias scalar
        ],
        out_specs=pl.BlockSpec((TB, Lp), lambda i: (i, 0)),
        compiler_params=pltpu.CompilerParams(
            dimension_semantics=("parallel",),   # megacore-shard batch tiles
            vmem_limit_bytes=32 * 1024 * 1024,
        ),
    )(q_p, mask_p, w, b)

    return out_p[:B, :L]


if __name__ == "__main__":
    key = jax.random.PRNGKey(0)
    k_q, k_w, k_b = jax.random.split(key, 3)

    B, L, D = 2, 8, 32  # batch, q_len, q_dim

    q = jax.random.normal(k_q, (B, L, D), dtype=jnp.float32)

    # Deterministic "Linear(q_dim, 1)" parameters: weight [1, D], bias [1].
    weight = jax.random.normal(k_w, (1, D), dtype=jnp.float32) * 0.1
    bias = jax.random.normal(k_b, (1,), dtype=jnp.float32) * 0.1

    # Padding mask: True == pad.  Valid lengths 6 and 8.
    lengths = jnp.array([6, 8], dtype=jnp.int32)
    q_mask = jnp.arange(L, dtype=jnp.int32)[None, :] >= lengths[:, None]  # (B, L)

    out = span_attention(q, q_mask, weight, bias)
    out = jax.block_until_ready(out)

    # Reference check in plain JAX (same semantics as the PyTorch forward).
    scores_ref = (q @ weight.T)[..., 0] + bias[0]
    scores_ref = jnp.where(q_mask, -jnp.inf, scores_ref)
    ref = jax.nn.softmax(scores_ref, axis=1)
    assert jnp.allclose(out, ref, atol=1e-5, rtol=1e-5)

    print("KERNEL_OK")
</pallas_src>

<mosaic_0001>
module attributes {stable_mosaic.version = 11 : i64} {
  func.func @span_attention_kernel(%arg0: i32, %arg1: memref<8x128x32xf32, #tpu.memory_space<vmem>>, %arg2: memref<8x128xi8, #tpu.memory_space<vmem>>, %arg3: memref<1x32xf32, #tpu.memory_space<vmem>>, %arg4: memref<1xf32, #tpu.memory_space<smem>>, %arg5: memref<8x128xf32, #tpu.memory_space<vmem>>) attributes {dimension_semantics = [#tpu.dimension_semantics<parallel>], iteration_bounds = array<i64: 1>, scalar_prefetch = 0 : i64, scratch_operands = 0 : i64, tpu.core_type = #tpu.core_type<tc>, window_params = [{transform_indices = @transform_0, window_bounds = array<i64: 8, 128, 32>}, {transform_indices = @transform_1, window_bounds = array<i64: 8, 128>}, {pipeline_mode = #tpu.pipeline_mode<synchronous>, transform_indices = @transform_2, window_bounds = array<i64: 1, 32>}, {transform_indices = @transform_3, window_bounds = array<i64: 1>}, {transform_indices = @transform_4, window_bounds = array<i64: 8, 128>}]} {
    %c0 = arith.constant 0 : index
    %c0_0 = arith.constant 0 : index
    %c0_1 = arith.constant 0 : index
    %0 = vector.load %arg1[%c0, %c0_0, %c0_1] : memref<8x128x32xf32, #tpu.memory_space<vmem>>, vector<8x128x32xf32>
    %c0_2 = arith.constant 0 : index
    %c0_3 = arith.constant 0 : index
    %1 = vector.load %arg3[%c0_2, %c0_3] : memref<1x32xf32, #tpu.memory_space<vmem>>, vector<1x32xf32>
    %2 = vector.shape_cast %1 : vector<1x32xf32> to vector<1x1x32xf32>
    %3 = vector.broadcast %2 : vector<1x1x32xf32> to vector<8x128x32xf32>
    %4 = arith.mulf %0, %3 : vector<8x128x32xf32>
    %cst = arith.constant dense<0.000000e+00> : vector<8x128xf32>
    %5 = vector.multi_reduction <add>, %4, %cst [2] : vector<8x128x32xf32> to vector<8x128xf32>
    %c0_4 = arith.constant 0 : index
    %6 = memref.load %arg4[%c0_4] : memref<1xf32, #tpu.memory_space<smem>>
    %7 = vector.broadcast %6 : f32 to vector<8x128xf32>
    %8 = arith.addf %5, %7 : vector<8x128xf32>
    %c0_5 = arith.constant 0 : index
    %c0_6 = arith.constant 0 : index
    %9 = vector.load %arg2[%c0_5, %c0_6] : memref<8x128xi8, #tpu.memory_space<vmem>>, vector<8x128xi8>
    %10 = arith.sitofp %9 : vector<8x128xi8> to vector<8x128xf32>
    %cst_7 = arith.constant 0.000000e+00 : f32
    %11 = vector.broadcast %cst_7 : f32 to vector<8x128xf32>
    %12 = arith.cmpf one, %10, %11 : vector<8x128xf32>
    %cst_8 = arith.constant 0xFF800000 : f32
    %13 = vector.broadcast %cst_8 : f32 to vector<8x128xf32>
    %14 = arith.select %12, %13, %8 : vector<8x128xi1>, vector<8x128xf32>
    %cst_9 = arith.constant dense<0xFF800000> : vector<8xf32>
    %15 = vector.multi_reduction <maximumf>, %14, %cst_9 [1] : vector<8x128xf32> to vector<8xf32>
    %16 = vector.shape_cast %15 : vector<8xf32> to vector<8x1xf32>
    %17 = vector.broadcast %16 : vector<8x1xf32> to vector<8x128xf32>
    %18 = arith.subf %14, %17 : vector<8x128xf32>
    %19 = math.exp %18 : vector<8x128xf32>
    %cst_10 = arith.constant dense<0.000000e+00> : vector<8xf32>
    %20 = vector.multi_reduction <add>, %19, %cst_10 [1] : vector<8x128xf32> to vector<8xf32>
    %21 = vector.shape_cast %20 : vector<8xf32> to vector<8x1xf32>
    %22 = tpu.reciprocal %21 : vector<8x1xf32> -> vector<8x1xf32>
    %23 = vector.broadcast %22 : vector<8x1xf32> to vector<8x128xf32>
    %24 = arith.mulf %19, %23 : vector<8x128xf32>
    %c0_11 = arith.constant 0 : index
    %c0_12 = arith.constant 0 : index
    %25 = vector.load %arg5[%c0_11, %c0_12] : memref<8x128xf32, #tpu.memory_space<vmem>>, vector<8x128xf32>
    tpu.vector_store %arg5[%c0_11, %c0_12], %24 {strides = array<i32>} : memref<8x128xf32, #tpu.memory_space<vmem>>, vector<8x128xf32>,
    return
  }
  func.func @transform_0(%arg0: i32) -> (i32, i32, i32) {
    %c0_i32 = arith.constant 0 : i32
    %c0_i32_0 = arith.constant 0 : i32
    %c0_i32_1 = arith.constant 0 : i32
    return %arg0, %c0_i32, %c0_i32_0 : i32, i32, i32
  }
  func.func @transform_1(%arg0: i32) -> (i32, i32) {
    %c0_i32 = arith.constant 0 : i32
    %c0_i32_0 = arith.constant 0 : i32
    return %arg0, %c0_i32 : i32, i32
  }
  func.func @transform_2(%arg0: i32) -> (i32, i32) {
    %c0_i32 = arith.constant 0 : i32
    %c0_i32_0 = arith.constant 0 : i32
    %c0_i32_1 = arith.constant 0 : i32
    return %c0_i32, %c0_i32_0 : i32, i32
  }
  func.func @transform_3(%arg0: i32) -> i32 {
    %c0_i32 = arith.constant 0 : i32
    %c0_i32_0 = arith.constant 0 : i32
    return %c0_i32 : i32
  }
  func.func @transform_4(%arg0: i32) -> (i32, i32) {
    %c0_i32 = arith.constant 0 : i32
    %c0_i32_0 = arith.constant 0 : i32
    return %arg0, %c0_i32 : i32, i32
  }
}

</mosaic_0001>

<llo_original>
// kernel: tpu_custom_call.1
$region0: #{tpu_custom_call.1}
  #allocation0 [shape = 'u32[]', space=smem, size = 0x4, offset = 0x4, fixed_abs, tag = 'smem constant byte address 0x4 - core index']
  #allocation1 [shape = 'u32[144,128]{1,0:T(1,128)}', space=vmem, size = 0x12000, scoped, tag = 'internal scratch']
  #allocation2 [shape = 'f32[1]{0:T(128)S(6)}', space=smem, size = 0x200, scoped, tag = 'scoped memory for tpu_custom_call.1']
  %s0 = inlined_call_operand.vmem [shape: f32[8,128,32], index: 0, kind: input, shape index: {}]
  %s1 = inlined_call_operand.vmem [shape: s8[8,128], index: 1, kind: input, shape index: {}]
  %s2 = inlined_call_operand.vmem [shape: f32[1,32], index: 2, kind: input, shape index: {}]
  %s3 = inlined_call_operand.<no memory space> [shape: f32[1], index: 3, kind: input, shape index: {}]
  %s4 = inlined_call_operand.hbm [shape: f32[8,128], index: 4, kind: output, shape index: {}]
  %s5 = sld [smem:[#allocation0]]
  $region26: #{tpu_custom_call.1} parent=0
    _
  %s7 = ssub.s32 1, %s5
  %s8 = scalar_select 0, %s7, %s5
  %9 = sst [smem:[#allocation2]] %s3
  $region1: #{tpu_custom_call.1} parent=0
    #allocation3 [shape = 'u8[4096]{0}', space=vmem, size = 0x1000, scoped, tag = 'output window, operand 0, single buffered']
    #allocation4 [shape = 's32[1]{0}', space=sflag, size = 0x4, scoped, tag = 'scoped memory for tpu_custom_call.1']
    %10 = vsyncpa [#allocation4], 0
    // Predicated region
    $region2: #{tpu_custom_call.1} parent=1 // pred_check
      _
    $region3: #{tpu_custom_call.1} parent=1 // pred_check_branch
      %12 = sbr.rel (0) target = $region5
    $region4: #{tpu_custom_call.1} parent=1 // pred_region
      _
    $region5: #{tpu_custom_call.1} parent=1 // pred_fallthru
      _
    // Predicated region
    $region6: #{tpu_custom_call.1} parent=1 // pred_check
      _
    $region7: #{tpu_custom_call.1} parent=1 // pred_check_branch
      %14 = sbr.rel (0) target = $region9
    $region8: #{tpu_custom_call.1} parent=1 // pred_region
      _
    $region9: #{tpu_custom_call.1} parent=1 // pred_fallthru
      _
    // Predicated region
    $region10: #{tpu_custom_call.1} parent=1 // pred_check
      _
    $region11: #{tpu_custom_call.1} parent=1 // pred_check_branch
      %16 = sbr.rel (0) target = $region13
    $region12: #{tpu_custom_call.1} parent=1 // pred_region
      _
    $region13: #{tpu_custom_call.1} parent=1 // pred_fallthru
      _
    // Predicated region
    $region14: #{tpu_custom_call.1} parent=1 // pred_check
      _
    $region15: #{tpu_custom_call.1} parent=1 // pred_check_branch
      %18 = sbr.rel (0) target = $region17
    $region16: #{tpu_custom_call.1} parent=1 // pred_region
      _
    $region17: #{tpu_custom_call.1} parent=1 // pred_fallthru
      _
    %v19 = vld [vmem:[%s0] sm:$0xff]
    %v20 = vld [vmem:[%s0 + $0x8] sm:$0xff]
    %v21 = vld [vmem:[%s0 + $0x10] sm:$0xff]
    %v22 = vld [vmem:[%s0 + $0x18] sm:$0xff]
    %v23 = vld [vmem:[%s0 + $0x20] sm:$0xff]
    %v24 = vld [vmem:[%s0 + $0x28] sm:$0xff]
    %v25 = vld [vmem:[%s0 + $0x30] sm:$0xff]
    %v26 = vld [vmem:[%s0 + $0x38] sm:$0xff]
    %v27 = vld [vmem:[%s0 + $0x40] sm:$0xff]
    %v28 = vld [vmem:[%s0 + $0x48] sm:$0xff]
    %v29 = vld [vmem:[%s0 + $0x50] sm:$0xff]
    %v30 = vld [vmem:[%s0 + $0x58] sm:$0xff]
    %v31 = vld [vmem:[%s0 + $0x60] sm:$0xff]
    %v32 = vld [vmem:[%s0 + $0x68] sm:$0xff]
    %v33 = vld [vmem:[%s0 + $0x70] sm:$0xff]
    %v34 = vld [vmem:[%s0 + $0x78] sm:$0xff]
    %v35 = vld [vmem:[%s0 + $0x80] sm:$0xff]
    %v36 = vld [vmem:[%s0 + $0x88] sm:$0xff]
    %v37 = vld [vmem:[%s0 + $0x90] sm:$0xff]
    %v38 = vld [vmem:[%s0 + $0x98] sm:$0xff]
    %v39 = vld [vmem:[%s0 + $0xa0] sm:$0xff]
    %v40 = vld [vmem:[%s0 + $0xa8] sm:$0xff]
    %v41 = vld [vmem:[%s0 + $0xb0] sm:$0xff]
    %v42 = vld [vmem:[%s0 + $0xb8] sm:$0xff]
    %v43 = vld [vmem:[%s0 + $0xc0] sm:$0xff]
    %v44 = vld [vmem:[%s0 + $0xc8] sm:$0xff]
    %v45 = vld [vmem:[%s0 + $0xd0] sm:$0xff]
    %v46 = vld [vmem:[%s0 + $0xd8] sm:$0xff]
    %v47 = vld [vmem:[%s0 + $0xe0] sm:$0xff]
    %v48 = vld [vmem:[%s0 + $0xe8] sm:$0xff]
    %v49 = vld [vmem:[%s0 + $0xf0] sm:$0xff]
    %v50 = vld [vmem:[%s0 + $0xf8] sm:$0xff]
    %v51 = vld [vmem:[%s0 + $0x100] sm:$0xff]
    %v52 = vld [vmem:[%s0 + $0x108] sm:$0xff]
    %v53 = vld [vmem:[%s0 + $0x110] sm:$0xff]
    %v54 = vld [vmem:[%s0 + $0x118] sm:$0xff]
    %v55 = vld [vmem:[%s0 + $0x120] sm:$0xff]
    %v56 = vld [vmem:[%s0 + $0x128] sm:$0xff]
    %v57 = vld [vmem:[%s0 + $0x130] sm:$0xff]
    %v58 = vld [vmem:[%s0 + $0x138] sm:$0xff]
    %v59 = vld [vmem:[%s0 + $0x140] sm:$0xff]
    %v60 = vld [vmem:[%s0 + $0x148] sm:$0xff]
    %v61 = vld [vmem:[%s0 + $0x150] sm:$0xff]
    %v62 = vld [vmem:[%s0 + $0x158] sm:$0xff]
    %v63 = vld [vmem:[%s0 + $0x160] sm:$0xff]
    %v64 = vld [vmem:[%s0 + $0x168] sm:$0xff]
    %v65 = vld [vmem:[%s0 + $0x170] sm:$0xff]
    %v66 = vld [vmem:[%s0 + $0x178] sm:$0xff]
    %v67 = vld [vmem:[%s0 + $0x180] sm:$0xff]
    %v68 = vld [vmem:[%s0 + $0x188] sm:$0xff]
    %v69 = vld [vmem:[%s0 + $0x190] sm:$0xff]
    %v70 = vld [vmem:[%s0 + $0x198] sm:$0xff]
    %v71 = vld [vmem:[%s0 + $0x1a0] sm:$0xff]
    %v72 = vld [vmem:[%s0 + $0x1a8] sm:$0xff]
    %v73 = vld [vmem:[%s0 + $0x1b0] sm:$0xff]
    %v74 = vld [vmem:[%s0 + $0x1b8] sm:$0xff]
    %v75 = vld [vmem:[%s0 + $0x1c0] sm:$0xff]
    %v76 = vld [vmem:[%s0 + $0x1c8] sm:$0xff]
    %v77 = vld [vmem:[%s0 + $0x1d0] sm:$0xff]
    %v78 = vld [vmem:[%s0 + $0x1d8] sm:$0xff]
    %v79 = vld [vmem:[%s0 + $0x1e0] sm:$0xff]
    %v80 = vld [vmem:[%s0 + $0x1e8] sm:$0xff]
    %v81 = vld [vmem:[%s0 + $0x1f0] sm:$0xff]
    %v82 = vld [vmem:[%s0 + $0x1f8] sm:$0xff]
    %v83 = vld [vmem:[%s0 + $0x200] sm:$0xff]
    %v84 = vld [vmem:[%s0 + $0x208] sm:$0xff]
    %v85 = vld [vmem:[%s0 + $0x210] sm:$0xff]
    %v86 = vld [vmem:[%s0 + $0x218] sm:$0xff]
    %v87 = vld [vmem:[%s0 + $0x220] sm:$0xff]
    %v88 = vld [vmem:[%s0 + $0x228] sm:$0xff]
    %v89 = vld [vmem:[%s0 + $0x230] sm:$0xff]
    %v90 = vld [vmem:[%s0 + $0x238] sm:$0xff]
    %v91 = vld [vmem:[%s0 + $0x240] sm:$0xff]
    %v92 = vld [vmem:[%s0 + $0x248] sm:$0xff]
    %v93 = vld [vmem:[%s0 + $0x250] sm:$0xff]
    %v94 = vld [vmem:[%s0 + $0x258] sm:$0xff]
    %v95 = vld [vmem:[%s0 + $0x260] sm:$0xff]
    %v96 = vld [vmem:[%s0 + $0x268] sm:$0xff]
    %v97 = vld [vmem:[%s0 + $0x270] sm:$0xff]
    %v98 = vld [vmem:[%s0 + $0x278] sm:$0xff]
    %v99 = vld [vmem:[%s0 + $0x280] sm:$0xff]
    %v100 = vld [vmem:[%s0 + $0x288] sm:$0xff]
    %v101 = vld [vmem:[%s0 + $0x290] sm:$0xff]
    %v102 = vld [vmem:[%s0 + $0x298] sm:$0xff]
    %v103 = vld [vmem:[%s0 + $0x2a0] sm:$0xff]
    %v104 = vld [vmem:[%s0 + $0x2a8] sm:$0xff]
    %v105 = vld [vmem:[%s0 + $0x2b0] sm:$0xff]
    %v106 = vld [vmem:[%s0 + $0x2b8] sm:$0xff]
    %v107 = vld [vmem:[%s0 + $0x2c0] sm:$0xff]
    %v108 = vld [vmem:[%s0 + $0x2c8] sm:$0xff]
    %v109 = vld [vmem:[%s0 + $0x2d0] sm:$0xff]
    %v110 = vld [vmem:[%s0 + $0x2d8] sm:$0xff]
    %v111 = vld [vmem:[%s0 + $0x2e0] sm:$0xff]
    %v112 = vld [vmem:[%s0 + $0x2e8] sm:$0xff]
    %v113 = vld [vmem:[%s0 + $0x2f0] sm:$0xff]
    %v114 = vld [vmem:[%s0 + $0x2f8] sm:$0xff]
    %v115 = vld [vmem:[%s0 + $0x300] sm:$0xff]
    %v116 = vld [vmem:[%s0 + $0x308] sm:$0xff]
    %v117 = vld [vmem:[%s0 + $0x310] sm:$0xff]
    %v118 = vld [vmem:[%s0 + $0x318] sm:$0xff]
    %v119 = vld [vmem:[%s0 + $0x320] sm:$0xff]
    %v120 = vld [vmem:[%s0 + $0x328] sm:$0xff]
    %v121 = vld [vmem:[%s0 + $0x330] sm:$0xff]
    %v122 = vld [vmem:[%s0 + $0x338] sm:$0xff]
    %v123 = vld [vmem:[%s0 + $0x340] sm:$0xff]
    %v124 = vld [vmem:[%s0 + $0x348] sm:$0xff]
    %v125 = vld [vmem:[%s0 + $0x350] sm:$0xff]
    %v126 = vld [vmem:[%s0 + $0x358] sm:$0xff]
    %v127 = vld [vmem:[%s0 + $0x360] sm:$0xff]
    %v128 = vld [vmem:[%s0 + $0x368] sm:$0xff]
    %v129 = vld [vmem:[%s0 + $0x370] sm:$0xff]
    %v130 = vld [vmem:[%s0 + $0x378] sm:$0xff]
    %v131 = vld [vmem:[%s0 + $0x380] sm:$0xff]
    %v132 = vld [vmem:[%s0 + $0x388] sm:$0xff]
    %v133 = vld [vmem:[%s0 + $0x390] sm:$0xff]
    %v134 = vld [vmem:[%s0 + $0x398] sm:$0xff]
    %v135 = vld [vmem:[%s0 + $0x3a0] sm:$0xff]
    %v136 = vld [vmem:[%s0 + $0x3a8] sm:$0xff]
    %v137 = vld [vmem:[%s0 + $0x3b0] sm:$0xff]
    %v138 = vld [vmem:[%s0 + $0x3b8] sm:$0xff]
    %v139 = vld [vmem:[%s0 + $0x3c0] sm:$0xff]
    %v140 = vld [vmem:[%s0 + $0x3c8] sm:$0xff]
    %v141 = vld [vmem:[%s0 + $0x3d0] sm:$0xff]
    %v142 = vld [vmem:[%s0 + $0x3d8] sm:$0xff]
    %v143 = vld [vmem:[%s0 + $0x3e0] sm:$0xff]
    %v144 = vld [vmem:[%s0 + $0x3e8] sm:$0xff]
    %v145 = vld [vmem:[%s0 + $0x3f0] sm:$0xff]
    %v146 = vld [vmem:[%s0 + $0x3f8] sm:$0xff]
    %v147 = vld [vmem:[%s2] sm:$0x1]
    %v149 = vlaneseq
    %v150 = vshrl.u32 %v149, 7
    %v151 = vsub.s32 0, %v150
    %v152 = vrot.slane %v147, %v151
    %v154 = vmul.f32 %v19, %v152
    %v155 = vmul.f32 %v20, %v152
    %v156 = vmul.f32 %v21, %v152
    %v157 = vmul.f32 %v22, %v152
    %v158 = vmul.f32 %v23, %v152
    %v159 = vmul.f32 %v24, %v152
    %v160 = vmul.f32 %v25, %v152
    %v161 = vmul.f32 %v26, %v152
    %v162 = vmul.f32 %v27, %v152
    %v163 = vmul.f32 %v28, %v152
    %v164 = vmul.f32 %v29, %v152
    %v165 = vmul.f32 %v30, %v152
    %v166 = vmul.f32 %v31, %v152
    %v167 = vmul.f32 %v32, %v152
    %v168 = vmul.f32 %v33, %v152
    %v169 = vmul.f32 %v34, %v152
    %v170 = vmul.f32 %v35, %v152
    %v171 = vmul.f32 %v36, %v152
    %v172 = vmul.f32 %v37, %v152
    %v173 = vmul.f32 %v38, %v152
    %v174 = vmul.f32 %v39, %v152
    %v175 = vmul.f32 %v40, %v152
    %v176 = vmul.f32 %v41, %v152
    %v177 = vmul.f32 %v42, %v152
    %v178 = vmul.f32 %v43, %v152
    %v179 = vmul.f32 %v44, %v152
    %v180 = vmul.f32 %v45, %v152
    %v181 = vmul.f32 %v46, %v152
    %v182 = vmul.f32 %v47, %v152
    %v183 = vmul.f32 %v48, %v152
    %v184 = vmul.f32 %v49, %v152
    %v185 = vmul.f32 %v50, %v152
    %v186 = vmul.f32 %v51, %v152
    %v187 = vmul.f32 %v52, %v152
    %v188 = vmul.f32 %v53, %v152
    %v189 = vmul.f32 %v54, %v152
    %v190 = vmul.f32 %v55, %v152
    %v191 = vmul.f32 %v56, %v152
    %v192 = vmul.f32 %v57, %v152
    %v193 = vmul.f32 %v58, %v152
    %v194 = vmul.f32 %v59, %v152
    %v195 = vmul.f32 %v60, %v152
    %v196 = vmul.f32 %v61, %v152
    %v197 = vmul.f32 %v62, %v152
    %v198 = vmul.f32 %v63, %v152
    %v199 = vmul.f32 %v64, %v152
    %v200 = vmul.f32 %v65, %v152
    %v201 = vmul.f32 %v66, %v152
    %v202 = vmul.f32 %v67, %v152
    %v203 = vmul.f32 %v68, %v152
    %v204 = vmul.f32 %v69, %v152
    %v205 = vmul.f32 %v70, %v152
    %v206 = vmul.f32 %v71, %v152
    %v207 = vmul.f32 %v72, %v152
    %v208 = vmul.f32 %v73, %v152
    %v209 = vmul.f32 %v74, %v152
    %v210 = vmul.f32 %v75, %v152
    %v211 = vmul.f32 %v76, %v152
    %v212 = vmul.f32 %v77, %v152
    %v213 = vmul.f32 %v78, %v152
    %v214 = vmul.f32 %v79, %v152
    %v215 = vmul.f32 %v80, %v152
    %v216 = vmul.f32 %v81, %v152
    %v217 = vmul.f32 %v82, %v152
    %v218 = vmul.f32 %v83, %v152
    %v219 = vmul.f32 %v84, %v152
    %v220 = vmul.f32 %v85, %v152
    %v221 = vmul.f32 %v86, %v152
    %v222 = vmul.f32 %v87, %v152
    %v223 = vmul.f32 %v88, %v152
    %v224 = vmul.f32 %v89, %v152
    %v225 = vmul.f32 %v90, %v152
    %v226 = vmul.f32 %v91, %v152
    %v227 = vmul.f32 %v92, %v152
    %v228 = vmul.f32 %v93, %v152
    %v229 = vmul.f32 %v94, %v152
    %v230 = vmul.f32 %v95, %v152
    %v231 = vmul.f32 %v96, %v152
    %v232 = vmul.f32 %v97, %v152
    %v233 = vmul.f32 %v98, %v152
    %v234 = vmul.f32 %v99, %v152
    %v235 = vmul.f32 %v100, %v152
    %v236 = vmul.f32 %v101, %v152
    %v237 = vmul.f32 %v102, %v152
    %v238 = vmul.f32 %v103, %v152
    %v239 = vmul.f32 %v104, %v152
    %v240 = vmul.f32 %v105, %v152
    %v241 = vmul.f32 %v106, %v152
    %v242 = vmul.f32 %v107, %v152
    %v243 = vmul.f32 %v108, %v152
    %v244 = vmul.f32 %v109, %v152
    %v245 = vmul.f32 %v110, %v152
    %v246 = vmul.f32 %v111, %v152
    %v247 = vmul.f32 %v112, %v152
    %v248 = vmul.f32 %v113, %v152
    %v249 = vmul.f32 %v114, %v152
    %v250 = vmul.f32 %v115, %v152
    %v251 = vmul.f32 %v116, %v152
    %v252 = vmul.f32 %v117, %v152
    %v253 = vmul.f32 %v118, %v152
    %v254 = vmul.f32 %v119, %v152
    %v255 = vmul.f32 %v120, %v152
    %v256 = vmul.f32 %v121, %v152
    %v257 = vmul.f32 %v122, %v152
    %v258 = vmul.f32 %v123, %v152
    %v259 = vmul.f32 %v124, %v152
    %v260 = vmul.f32 %v125, %v152
    %v261 = vmul.f32 %v126, %v152
    %v262 = vmul.f32 %v127, %v152
    %v263 = vmul.f32 %v128, %v152
    %v264 = vmul.f32 %v129, %v152
    %v265 = vmul.f32 %v130, %v152
    %v266 = vmul.f32 %v131, %v152
    %v267 = vmul.f32 %v132, %v152
    %v268 = vmul.f32 %v133, %v152
    %v269 = vmul.f32 %v134, %v152
    %v270 = vmul.f32 %v135, %v152
    %v271 = vmul.f32 %v136, %v152
    %v272 = vmul.f32 %v137, %v152
    %v273 = vmul.f32 %v138, %v152
    %v274 = vmul.f32 %v139, %v152
    %v275 = vmul.f32 %v140, %v152
    %v276 = vmul.f32 %v141, %v152
    %v277 = vmul.f32 %v142, %v152
    %v278 = vmul.f32 %v143, %v152
    %v279 = vmul.f32 %v144, %v152
    %v280 = vmul.f32 %v145, %v152
    %v281 = vmul.f32 %v146, %v152
    %vm282 = vcmask 261120
    %v283 = vsel %vm282, %v154, 0.0
    %284 = vadd.xlane.f32.xlu0 %v283
    %v285 = vpop.xlane.xlu0 %284
    %v286 = vsel %vm282, %v155, 0.0
    %287 = vadd.xlane.f32.xlu0 %v286
    %v288 = vpop.xlane.xlu0 %287
    %v289 = vsel %vm282, %v156, 0.0
    %290 = vadd.xlane.f32.xlu0 %v289
    %v291 = vpop.xlane.xlu0 %290
    %v292 = vsel %vm282, %v157, 0.0
    %293 = vadd.xlane.f32.xlu0 %v292
    %v294 = vpop.xlane.xlu0 %293
    %v295 = vsel %vm282, %v158, 0.0
    %296 = vadd.xlane.f32.xlu0 %v295
    %v297 = vpop.xlane.xlu0 %296
    %v298 = vsel %vm282, %v159, 0.0
    %299 = vadd.xlane.f32.xlu0 %v298
    %v300 = vpop.xlane.xlu0 %299
    %v301 = vsel %vm282, %v160, 0.0
    %302 = vadd.xlane.f32.xlu0 %v301
    %v303 = vpop.xlane.xlu0 %302
    %v304 = vsel %vm282, %v161, 0.0
    %305 = vadd.xlane.f32.xlu0 %v304
    %v306 = vpop.xlane.xlu0 %305
    %v307 = vsel %vm282, %v162, 0.0
    %308 = vadd.xlane.f32.xlu0 %v307
    %v309 = vpop.xlane.xlu0 %308
    %v310 = vsel %vm282, %v163, 0.0
    %311 = vadd.xlane.f32.xlu0 %v310
    %v312 = vpop.xlane.xlu0 %311
    %v313 = vsel %vm282, %v164, 0.0
    %314 = vadd.xlane.f32.xlu0 %v313
    %v315 = vpop.xlane.xlu0 %314
    %v316 = vsel %vm282, %v165, 0.0
    %317 = vadd.xlane.f32.xlu0 %v316
    %v318 = vpop.xlane.xlu0 %317
    %v319 = vsel %vm282, %v166, 0.0
    %320 = vadd.xlane.f32.xlu0 %v319
    %v321 = vpop.xlane.xlu0 %320
    %v322 = vsel %vm282, %v167, 0.0
    %323 = vadd.xlane.f32.xlu0 %v322
    %v324 = vpop.xlane.xlu0 %323
    %v325 = vsel %vm282, %v168, 0.0
    %326 = vadd.xlane.f32.xlu0 %v325
    %v327 = vpop.xlane.xlu0 %326
    %v328 = vsel %vm282, %v169, 0.0
    %329 = vadd.xlane.f32.xlu0 %v328
    %v330 = vpop.xlane.xlu0 %329
    %v331 = vsel %vm282, %v170, 0.0
    %332 = vadd.xlane.f32.xlu0 %v331
    %v333 = vpop.xlane.xlu0 %332
    %v334 = vsel %vm282, %v171, 0.0
    %335 = vadd.xlane.f32.xlu0 %v334
    %v336 = vpop.xlane.xlu0 %335
    %v337 = vsel %vm282, %v172, 0.0
    %338 = vadd.xlane.f32.xlu0 %v337
    %v339 = vpop.xlane.xlu0 %338
    %v340 = vsel %vm282, %v173, 0.0
    %341 = vadd.xlane.f32.xlu0 %v340
    %v342 = vpop.xlane.xlu0 %341
    %v343 = vsel %vm282, %v174, 0.0
    %344 = vadd.xlane.f32.xlu0 %v343
    %v345 = vpop.xlane.xlu0 %344
    %v346 = vsel %vm282, %v175, 0.0
    %347 = vadd.xlane.f32.xlu0 %v346
    %v348 = vpop.xlane.xlu0 %347
    %v349 = vsel %vm282, %v176, 0.0
    %350 = vadd.xlane.f32.xlu0 %v349
    %v351 = vpop.xlane.xlu0 %350
    %v352 = vsel %vm282, %v177, 0.0
    %353 = vadd.xlane.f32.xlu0 %v352
    %v354 = vpop.xlane.xlu0 %353
    %v355 = vsel %vm282, %v178, 0.0
    %356 = vadd.xlane.f32.xlu0 %v355
    %v357 = vpop.xlane.xlu0 %356
    %v358 = vsel %vm282, %v179, 0.0
    %359 = vadd.xlane.f32.xlu0 %v358
    %v360 = vpop.xlane.xlu0 %359
    %v361 = vsel %vm282, %v180, 0.0
    %362 = vadd.xlane.f32.xlu0 %v361
    %v363 = vpop.xlane.xlu0 %362
    %v364 = vsel %vm282, %v181, 0.0
    %365 = vadd.xlane.f32.xlu0 %v364
    %v366 = vpop.xlane.xlu0 %365
    %v367 = vsel %vm282, %v182, 0.0
    %368 = vadd.xlane.f32.xlu0 %v367
    %v369 = vpop.xlane.xlu0 %368
    %v370 = vsel %vm282, %v183, 0.0
    %371 = vadd.xlane.f32.xlu0 %v370
    %v372 = vpop.xlane.xlu0 %371
    %v373 = vsel %vm282, %v184, 0.0
    %374 = vadd.xlane.f32.xlu0 %v373
    %v375 = vpop.xlane.xlu0 %374
    %v376 = vsel %vm282, %v185, 0.0
    %377 = vadd.xlane.f32.xlu0 %v376
    %v378 = vpop.xlane.xlu0 %377
    %v379 = vsel %vm282, %v186, 0.0
    %380 = vadd.xlane.f32.xlu0 %v379
    %v381 = vpop.xlane.xlu0 %380
    %v382 = vsel %vm282, %v187, 0.0
    %383 = vadd.xlane.f32.xlu0 %v382
    %v384 = vpop.xlane.xlu0 %383
    %v385 = vsel %vm282, %v188, 0.0
    %386 = vadd.xlane.f32.xlu0 %v385
    %v387 = vpop.xlane.xlu0 %386
    %v388 = vsel %vm282, %v189, 0.0
    %389 = vadd.xlane.f32.xlu0 %v388
    %v390 = vpop.xlane.xlu0 %389
    %v391 = vsel %vm282, %v190, 0.0
    %392 = vadd.xlane.f32.xlu0 %v391
    %v393 = vpop.xlane.xlu0 %392
    %v394 = vsel %vm282, %v191, 0.0
    %395 = vadd.xlane.f32.xlu0 %v394
    %v396 = vpop.xlane.xlu0 %395
    %v397 = vsel %vm282, %v192, 0.0
    %398 = vadd.xlane.f32.xlu0 %v397
    %v399 = vpop.xlane.xlu0 %398
    %v400 = vsel %vm282, %v193, 0.0
    %401 = vadd.xlane.f32.xlu0 %v400
    %v402 = vpop.xlane.xlu0 %401
    %v403 = vsel %vm282, %v194, 0.0
    %404 = vadd.xlane.f32.xlu0 %v403
    %v405 = vpop.xlane.xlu0 %404
    %v406 = vsel %vm282, %v195, 0.0
    %407 = vadd.xlane.f32.xlu0 %v406
    %v408 = vpop.xlane.xlu0 %407
    %v409 = vsel %vm282, %v196, 0.0
    %410 = vadd.xlane.f32.xlu0 %v409
    %v411 = vpop.xlane.xlu0 %410
    %v412 = vsel %vm282, %v197, 0.0
    %413 = vadd.xlane.f32.xlu0 %v412
    %v414 = vpop.xlane.xlu0 %413
    %v415 = vsel %vm282, %v198, 0.0
    %416 = vadd.xlane.f32.xlu0 %v415
    %v417 = vpop.xlane.xlu0 %416
    %v418 = vsel %vm282, %v199, 0.0
    %419 = vadd.xlane.f32.xlu0 %v418
    %v420 = vpop.xlane.xlu0 %419
    %v421 = vsel %vm282, %v200, 0.0
    %422 = vadd.xlane.f32.xlu0 %v421
    %v423 = vpop.xlane.xlu0 %422
    %v424 = vsel %vm282, %v201, 0.0
    %425 = vadd.xlane.f32.xlu0 %v424
    %v426 = vpop.xlane.xlu0 %425
    %v427 = vsel %vm282, %v202, 0.0
    %428 = vadd.xlane.f32.xlu0 %v427
    %v429 = vpop.xlane.xlu0 %428
    %v430 = vsel %vm282, %v203, 0.0
    %431 = vadd.xlane.f32.xlu0 %v430
    %v432 = vpop.xlane.xlu0 %431
    %v433 = vsel %vm282, %v204, 0.0
    %434 = vadd.xlane.f32.xlu0 %v433
    %v435 = vpop.xlane.xlu0 %434
    %v436 = vsel %vm282, %v205, 0.0
    %437 = vadd.xlane.f32.xlu0 %v436
    %v438 = vpop.xlane.xlu0 %437
    %v439 = vsel %vm282, %v206, 0.0
    %440 = vadd.xlane.f32.xlu0 %v439
    %v441 = vpop.xlane.xlu0 %440
    %v442 = vsel %vm282, %v207, 0.0
    %443 = vadd.xlane.f32.xlu0 %v442
    %v444 = vpop.xlane.xlu0 %443
    %v445 = vsel %vm282, %v208, 0.0
    %446 = vadd.xlane.f32.xlu0 %v445
    %v447 = vpop.xlane.xlu0 %446
    %v448 = vsel %vm282, %v209, 0.0
    %449 = vadd.xlane.f32.xlu0 %v448
    %v450 = vpop.xlane.xlu0 %449
    %v451 = vsel %vm282, %v210, 0.0
    %452 = vadd.xlane.f32.xlu0 %v451
    %v453 = vpop.xlane.xlu0 %452
    %v454 = vsel %vm282, %v211, 0.0
    %455 = vadd.xlane.f32.xlu0 %v454
    %v456 = vpop.xlane.xlu0 %455
    %v457 = vsel %vm282, %v212, 0.0
    %458 = vadd.xlane.f32.xlu0 %v457
    %v459 = vpop.xlane.xlu0 %458
    %v460 = vsel %vm282, %v213, 0.0
    %461 = vadd.xlane.f32.xlu0 %v460
    %v462 = vpop.xlane.xlu0 %461
    %v463 = vsel %vm282, %v214, 0.0
    %464 = vadd.xlane.f32.xlu0 %v463
    %v465 = vpop.xlane.xlu0 %464
    %v466 = vsel %vm282, %v215, 0.0
    %467 = vadd.xlane.f32.xlu0 %v466
    %v468 = vpop.xlane.xlu0 %467
    %v469 = vsel %vm282, %v216, 0.0
    %470 = vadd.xlane.f32.xlu0 %v469
    %v471 = vpop.xlane.xlu0 %470
    %v472 = vsel %vm282, %v217, 0.0
    %473 = vadd.xlane.f32.xlu0 %v472
    %v474 = vpop.xlane.xlu0 %473
    %v475 = vsel %vm282, %v218, 0.0
    %476 = vadd.xlane.f32.xlu0 %v475
    %v477 = vpop.xlane.xlu0 %476
    %v478 = vsel %vm282, %v219, 0.0
    %479 = vadd.xlane.f32.xlu0 %v478
    %v480 = vpop.xlane.xlu0 %479
    %v481 = vsel %vm282, %v220, 0.0
    %482 = vadd.xlane.f32.xlu0 %v481
    %v483 = vpop.xlane.xlu0 %482
    %v484 = vsel %vm282, %v221, 0.0
    %485 = vadd.xlane.f32.xlu0 %v484
    %v486 = vpop.xlane.xlu0 %485
    %v487 = vsel %vm282, %v222, 0.0
    %488 = vadd.xlane.f32.xlu0 %v487
    %v489 = vpop.xlane.xlu0 %488
    %v490 = vsel %vm282, %v223, 0.0
    %491 = vadd.xlane.f32.xlu0 %v490
    %v492 = vpop.xlane.xlu0 %491
    %v493 = vsel %vm282, %v224, 0.0
    %494 = vadd.xlane.f32.xlu0 %v493
    %v495 = vpop.xlane.xlu0 %494
    %v496 = vsel %vm282, %v225, 0.0
    %497 = vadd.xlane.f32.xlu0 %v496
    %v498 = vpop.xlane.xlu0 %497
    %v499 = vsel %vm282, %v226, 0.0
    %500 = vadd.xlane.f32.xlu0 %v499
    %v501 = vpop.xlane.xlu0 %500
    %v502 = vsel %vm282, %v227, 0.0
    %503 = vadd.xlane.f32.xlu0 %v502
    %v504 = vpop.xlane.xlu0 %503
    %v505 = vsel %vm282, %v228, 0.0
    %506 = vadd.xlane.f32.xlu0 %v505
    %v507 = vpop.xlane.xlu0 %506
    %v508 = vsel %vm282, %v229, 0.0
    %509 = vadd.xlane.f32.xlu0 %v508
    %v510 = vpop.xlane.xlu0 %509
    %v511 = vsel %vm282, %v230, 0.0
    %512 = vadd.xlane.f32.xlu0 %v511
    %v513 = vpop.xlane.xlu0 %512
    %v514 = vsel %vm282, %v231, 0.0
    %515 = vadd.xlane.f32.xlu0 %v514
    %v516 = vpop.xlane.xlu0 %515
    %v517 = vsel %vm282, %v232, 0.0
    %518 = vadd.xlane.f32.xlu0 %v517
    %v519 = vpop.xlane.xlu0 %518
    %v520 = vsel %vm282, %v233, 0.0
    %521 = vadd.xlane.f32.xlu0 %v520
    %v522 = vpop.xlane.xlu0 %521
    %v523 = vsel %vm282, %v234, 0.0
    %524 = vadd.xlane.f32.xlu0 %v523
    %v525 = vpop.xlane.xlu0 %524
    %v526 = vsel %vm282, %v235, 0.0
    %527 = vadd.xlane.f32.xlu0 %v526
    %v528 = vpop.xlane.xlu0 %527
    %v529 = vsel %vm282, %v236, 0.0
    %530 = vadd.xlane.f32.xlu0 %v529
    %v531 = vpop.xlane.xlu0 %530
    %v532 = vsel %vm282, %v237, 0.0
    %533 = vadd.xlane.f32.xlu0 %v532
    %v534 = vpop.xlane.xlu0 %533
    %v535 = vsel %vm282, %v238, 0.0
    %536 = vadd.xlane.f32.xlu0 %v535
    %v537 = vpop.xlane.xlu0 %536
    %v538 = vsel %vm282, %v239, 0.0
    %539 = vadd.xlane.f32.xlu0 %v538
    %v540 = vpop.xlane.xlu0 %539
    %v541 = vsel %vm282, %v240, 0.0
    %542 = vadd.xlane.f32.xlu0 %v541
    %v543 = vpop.xlane.xlu0 %542
    %v544 = vsel %vm282, %v241, 0.0
    %545 = vadd.xlane.f32.xlu0 %v544
    %v546 = vpop.xlane.xlu0 %545
    %v547 = vsel %vm282, %v242, 0.0
    %548 = vadd.xlane.f32.xlu0 %v547
    %v549 = vpop.xlane.xlu0 %548
    %v550 = vsel %vm282, %v243, 0.0
    %551 = vadd.xlane.f32.xlu0 %v550
    %v552 = vpop.xlane.xlu0 %551
    %v553 = vsel %vm282, %v244, 0.0
    %554 = vadd.xlane.f32.xlu0 %v553
    %v555 = vpop.xlane.xlu0 %554
    %v556 = vsel %vm282, %v245, 0.0
    %557 = vadd.xlane.f32.xlu0 %v556
    %v558 = vpop.xlane.xlu0 %557
    %v559 = vsel %vm282, %v246, 0.0
    %560 = vadd.xlane.f32.xlu0 %v559
    %v561 = vpop.xlane.xlu0 %560
    %v562 = vsel %vm282, %v247, 0.0
    %563 = vadd.xlane.f32.xlu0 %v562
    %v564 = vpop.xlane.xlu0 %563
    %v565 = vsel %vm282, %v248, 0.0
    %566 = vadd.xlane.f32.xlu0 %v565
    %v567 = vpop.xlane.xlu0 %566
    %v568 = vsel %vm282, %v249, 0.0
    %569 = vadd.xlane.f32.xlu0 %v568
    %v570 = vpop.xlane.xlu0 %569
    %v571 = vsel %vm282, %v250, 0.0
    %572 = vadd.xlane.f32.xlu0 %v571
    %v573 = vpop.xlane.xlu0 %572
    %v574 = vsel %vm282, %v251, 0.0
    %575 = vadd.xlane.f32.xlu0 %v574
    %v576 = vpop.xlane.xlu0 %575
    %v577 = vsel %vm282, %v252, 0.0
    %578 = vadd.xlane.f32.xlu0 %v577
    %v579 = vpop.xlane.xlu0 %578
    %v580 = vsel %vm282, %v253, 0.0
    %581 = vadd.xlane.f32.xlu0 %v580
    %v582 = vpop.xlane.xlu0 %581
    %v583 = vsel %vm282, %v254, 0.0
    %584 = vadd.xlane.f32.xlu0 %v583
    %v585 = vpop.xlane.xlu0 %584
    %v586 = vsel %vm282, %v255, 0.0
    %587 = vadd.xlane.f32.xlu0 %v586
    %v588 = vpop.xlane.xlu0 %587
    %v589 = vsel %vm282, %v256, 0.0
    %590 = vadd.xlane.f32.xlu0 %v589
    %v591 = vpop.xlane.xlu0 %590
    %v592 = vsel %vm282, %v257, 0.0
    %593 = vadd.xlane.f32.xlu0 %v592
    %v594 = vpop.xlane.xlu0 %593
    %v595 = vsel %vm282, %v258, 0.0
    %596 = vadd.xlane.f32.xlu0 %v595
    %v597 = vpop.xlane.xlu0 %596
    %v598 = vsel %vm282, %v259, 0.0
    %599 = vadd.xlane.f32.xlu0 %v598
    %v600 = vpop.xlane.xlu0 %599
    %v601 = vsel %vm282, %v260, 0.0
    %602 = vadd.xlane.f32.xlu0 %v601
    %v603 = vpop.xlane.xlu0 %602
    %v604 = vsel %vm282, %v261, 0.0
    %605 = vadd.xlane.f32.xlu0 %v604
    %v606 = vpop.xlane.xlu0 %605
    %v607 = vsel %vm282, %v262, 0.0
    %608 = vadd.xlane.f32.xlu0 %v607
    %v609 = vpop.xlane.xlu0 %608
    %v610 = vsel %vm282, %v263, 0.0
    %611 = vadd.xlane.f32.xlu0 %v610
    %v612 = vpop.xlane.xlu0 %611
    %v613 = vsel %vm282, %v264, 0.0
    %614 = vadd.xlane.f32.xlu0 %v613
    %v615 = vpop.xlane.xlu0 %614
    %v616 = vsel %vm282, %v265, 0.0
    %617 = vadd.xlane.f32.xlu0 %v616
    %v618 = vpop.xlane.xlu0 %617
    %v619 = vsel %vm282, %v266, 0.0
    %620 = vadd.xlane.f32.xlu0 %v619
    %v621 = vpop.xlane.xlu0 %620
    %v622 = vsel %vm282, %v267, 0.0
    %623 = vadd.xlane.f32.xlu0 %v622
    %v624 = vpop.xlane.xlu0 %623
    %v625 = vsel %vm282, %v268, 0.0
    %626 = vadd.xlane.f32.xlu0 %v625
    %v627 = vpop.xlane.xlu0 %626
    %v628 = vsel %vm282, %v269, 0.0
    %629 = vadd.xlane.f32.xlu0 %v628
    %v630 = vpop.xlane.xlu0 %629
    %v631 = vsel %vm282, %v270, 0.0
    %632 = vadd.xlane.f32.xlu0 %v631
    %v633 = vpop.xlane.xlu0 %632
    %v634 = vsel %vm282, %v271, 0.0
    %635 = vadd.xlane.f32.xlu0 %v634
    %v636 = vpop.xlane.xlu0 %635
    %v637 = vsel %vm282, %v272, 0.0
    %638 = vadd.xlane.f32.xlu0 %v637
    %v639 = vpop.xlane.xlu0 %638
    %v640 = vsel %vm282, %v273, 0.0
    %641 = vadd.xlane.f32.xlu0 %v640
    %v642 = vpop.xlane.xlu0 %641
    %v643 = vsel %vm282, %v274, 0.0
    %644 = vadd.xlane.f32.xlu0 %v643
    %v645 = vpop.xlane.xlu0 %644
    %v646 = vsel %vm282, %v275, 0.0
    %647 = vadd.xlane.f32.xlu0 %v646
    %v648 = vpop.xlane.xlu0 %647
    %v649 = vsel %vm282, %v276, 0.0
    %650 = vadd.xlane.f32.xlu0 %v649
    %v651 = vpop.xlane.xlu0 %650
    %v652 = vsel %vm282, %v277, 0.0
    %653 = vadd.xlane.f32.xlu0 %v652
    %v654 = vpop.xlane.xlu0 %653
    %v655 = vsel %vm282, %v278, 0.0
    %656 = vadd.xlane.f32.xlu0 %v655
    %v657 = vpop.xlane.xlu0 %656
    %v658 = vsel %vm282, %v279, 0.0
    %659 = vadd.xlane.f32.xlu0 %v658
    %v660 = vpop.xlane.xlu0 %659
    %v661 = vsel %vm282, %v280, 0.0
    %662 = vadd.xlane.f32.xlu0 %v661
    %v663 = vpop.xlane.xlu0 %662
    %v664 = vsel %vm282, %v281, 0.0
    %665 = vadd.xlane.f32.xlu0 %v664
    %v666 = vpop.xlane.xlu0 %665
    %s667 = sld [smem:[#allocation2]]
    %v668 = vstv %s667
    %v669 = vadd.f32 %v285, %v668
    %v670 = vadd.f32 %v288, %v668
    %v671 = vadd.f32 %v291, %v668
    %v672 = vadd.f32 %v294, %v668
    %v673 = vadd.f32 %v297, %v668
    %v674 = vadd.f32 %v300, %v668
    %v675 = vadd.f32 %v303, %v668
    %v676 = vadd.f32 %v306, %v668
    %v677 = vadd.f32 %v309, %v668
    %v678 = vadd.f32 %v312, %v668
    %v679 = vadd.f32 %v315, %v668
    %v680 = vadd.f32 %v318, %v668
    %v681 = vadd.f32 %v321, %v668
    %v682 = vadd.f32 %v324, %v668
    %v683 = vadd.f32 %v327, %v668
    %v684 = vadd.f32 %v330, %v668
    %v685 = vadd.f32 %v333, %v668
    %v686 = vadd.f32 %v336, %v668
    %v687 = vadd.f32 %v339, %v668
    %v688 = vadd.f32 %v342, %v668
    %v689 = vadd.f32 %v345, %v668
    %v690 = vadd.f32 %v348, %v668
    %v691 = vadd.f32 %v351, %v668
    %v692 = vadd.f32 %v354, %v668
    %v693 = vadd.f32 %v357, %v668
    %v694 = vadd.f32 %v360, %v668
    %v695 = vadd.f32 %v363, %v668
    %v696 = vadd.f32 %v366, %v668
    %v697 = vadd.f32 %v369, %v668
    %v698 = vadd.f32 %v372, %v668
    %v699 = vadd.f32 %v375, %v668
    %v700 = vadd.f32 %v378, %v668
    %v701 = vadd.f32 %v381, %v668
    %v702 = vadd.f32 %v384, %v668
    %v703 = vadd.f32 %v387, %v668
    %v704 = vadd.f32 %v390, %v668
    %v705 = vadd.f32 %v393, %v668
    %v706 = vadd.f32 %v396, %v668
    %v707 = vadd.f32 %v399, %v668
    %v708 = vadd.f32 %v402, %v668
    %v709 = vadd.f32 %v405, %v668
    %v710 = vadd.f32 %v408, %v668
    %v711 = vadd.f32 %v411, %v668
    %v712 = vadd.f32 %v414, %v668
    %v713 = vadd.f32 %v417, %v668
    %v714 = vadd.f32 %v420, %v668
    %v715 = vadd.f32 %v423, %v668
    %v716 = vadd.f32 %v426, %v668
    %v717 = vadd.f32 %v429, %v668
    %v718 = vadd.f32 %v432, %v668
    %v719 = vadd.f32 %v435, %v668
    %v720 = vadd.f32 %v438, %v668
    %v721 = vadd.f32 %v441, %v668
    %v722 = vadd.f32 %v444, %v668
    %v723 = vadd.f32 %v447, %v668
    %v724 = vadd.f32 %v450, %v668
    %v725 = vadd.f32 %v453, %v668
    %v726 = vadd.f32 %v456, %v668
    %v727 = vadd.f32 %v459, %v668
    %v728 = vadd.f32 %v462, %v668
    %v729 = vadd.f32 %v465, %v668
    %v730 = vadd.f32 %v468, %v668
    %v731 = vadd.f32 %v471, %v668
    %v732 = vadd.f32 %v474, %v668
    %v733 = vadd.f32 %v477, %v668
    %v734 = vadd.f32 %v480, %v668
    %v735 = vadd.f32 %v483, %v668
    %v736 = vadd.f32 %v486, %v668
    %v737 = vadd.f32 %v489, %v668
    %v738 = vadd.f32 %v492, %v668
    %v739 = vadd.f32 %v495, %v668
    %v740 = vadd.f32 %v498, %v668
    %v741 = vadd.f32 %v501, %v668
    %v742 = vadd.f32 %v504, %v668
    %v743 = vadd.f32 %v507, %v668
    %v744 = vadd.f32 %v510, %v668
    %v745 = vadd.f32 %v513, %v668
    %v746 = vadd.f32 %v516, %v668
    %v747 = vadd.f32 %v519, %v668
    %v748 = vadd.f32 %v522, %v668
    %v749 = vadd.f32 %v525, %v668
    %v750 = vadd.f32 %v528, %v668
    %v751 = vadd.f32 %v531, %v668
    %v752 = vadd.f32 %v534, %v668
    %v753 = vadd.f32 %v537, %v668
    %v754 = vadd.f32 %v540, %v668
    %v755 = vadd.f32 %v543, %v668
    %v756 = vadd.f32 %v546, %v668
    %v757 = vadd.f32 %v549, %v668
    %v758 = vadd.f32 %v552, %v668
    %v759 = vadd.f32 %v555, %v668
    %v760 = vadd.f32 %v558, %v668
    %v761 = vadd.f32 %v561, %v668
    %v762 = vadd.f32 %v564, %v668
    %v763 = vadd.f32 %v567, %v668
    %v764 = vadd.f32 %v570, %v668
    %v765 = vadd.f32 %v573, %v668
    %v766 = vadd.f32 %v576, %v668
    %v767 = vadd.f32 %v579, %v668
    %v768 = vadd.f32 %v582, %v668
    %v769 = vadd.f32 %v585, %v668
    %v770 = vadd.f32 %v588, %v668
    %v771 = vadd.f32 %v591, %v668
    %v772 = vadd.f32 %v594, %v668
    %v773 = vadd.f32 %v597, %v668
    %v774 = vadd.f32 %v600, %v668
    %v775 = vadd.f32 %v603, %v668
    %v776 = vadd.f32 %v606, %v668
    %v777 = vadd.f32 %v609, %v668
    %v778 = vadd.f32 %v612, %v668
    %v779 = vadd.f32 %v615, %v668
    %v780 = vadd.f32 %v618, %v668
    %v781 = vadd.f32 %v621, %v668
    %v782 = vadd.f32 %v624, %v668
    %v783 = vadd.f32 %v627, %v668
    %v784 = vadd.f32 %v630, %v668
    %v785 = vadd.f32 %v633, %v668
    %v786 = vadd.f32 %v636, %v668
    %v787 = vadd.f32 %v639, %v668
    %v788 = vadd.f32 %v642, %v668
    %v789 = vadd.f32 %v645, %v668
    %v790 = vadd.f32 %v648, %v668
    %v791 = vadd.f32 %v651, %v668
    %v792 = vadd.f32 %v654, %v668
    %v793 = vadd.f32 %v657, %v668
    %v794 = vadd.f32 %v660, %v668
    %v795 = vadd.f32 %v663, %v668
    %v796 = vadd.f32 %v666, %v668
    %v797 = vld [vmem:[%s1] sm:$0x3]
    %v798 = vunpack.c.0.s8 %v797
    %v799 = vcvt.s32.f32 %v798
    %vm800 = vcmp.ne.f32.partialorder %v799, 0.0
    %v929 = vlaneseq
    %v930 = vand.u32 %v929, 127
    %v931 = vlaneseq
    %v932 = vshrl.u32 %v931, 7
    %v933 = vsub.s32 %v930, %v932
    %v934 = vrot.slane %v669, %v933
    %v935 = vadd.s32 %v930, 4294967288
    %v936 = vlaneseq
    %v937 = vshrl.u32 %v936, 7
    %v938 = vsub.s32 %v935, %v937
    %v939 = vrot.slane %v670, %v938
    %vm940 = vcmask 130112
    %v941 = vsel %vm940, %v939, %v934
    %v942 = vadd.s32 %v930, 4294967280
    %v943 = vlaneseq
    %v944 = vshrl.u32 %v943, 7
    %v945 = vsub.s32 %v942, %v944
    %v946 = vrot.slane %v671, %v945
    %vm947 = vcmask 195712
    %v948 = vsel %vm947, %v946, %v941
    %v949 = vadd.s32 %v930, 4294967272
    %v950 = vlaneseq
    %v951 = vshrl.u32 %v950, 7
    %v952 = vsub.s32 %v949, %v951
    %v953 = vrot.slane %v672, %v952
    %vm954 = vcmask 261312
    %v955 = vsel %vm954, %v953, %v948
    %v956 = vadd.s32 %v930, 4294967264
    %v957 = vlaneseq
    %v958 = vshrl.u32 %v957, 7
    %v959 = vsub.s32 %v956, %v958
    %v960 = vrot.slane %v673, %v959
    %vm961 = vcmask 326912
    %v962 = vsel %vm961, %v960, %v955
    %v963 = vadd.s32 %v930, 4294967256
    %v964 = vlaneseq
    %v965 = vshrl.u32 %v964, 7
    %v966 = vsub.s32 %v963, %v965
    %v967 = vrot.slane %v674, %v966
    %vm968 = vcmask 392512
    %v969 = vsel %vm968, %v967, %v962
    %v970 = vadd.s32 %v930, 4294967248
    %v971 = vlaneseq
    %v972 = vshrl.u32 %v971, 7
    %v973 = vsub.s32 %v970, %v972
    %v974 = vrot.slane %v675, %v973
    %vm975 = vcmask 458112
    %v976 = vsel %vm975, %v974, %v969
    %v977 = vadd.s32 %v930, 4294967240
    %v978 = vlaneseq
    %v979 = vshrl.u32 %v978, 7
    %v980 = vsub.s32 %v977, %v979
    %v981 = vrot.slane %v676, %v980
    %vm982 = vcmask 523712
    %v983 = vsel %vm982, %v981, %v976
    %v984 = vadd.s32 %v930, 4294967232
    %v985 = vlaneseq
    %v986 = vshrl.u32 %v985, 7
    %v987 = vsub.s32 %v984, %v986
    %v988 = vrot.slane %v677, %v987
    %vm989 = vcmask 589312
    %v990 = vsel %vm989, %v988, %v983
    %v991 = vadd.s32 %v930, 4294967224
    %v992 = vlaneseq
    %v993 = vshrl.u32 %v992, 7
    %v994 = vsub.s32 %v991, %v993
    %v995 = vrot.slane %v678, %v994
    %vm996 = vcmask 654912
    %v997 = vsel %vm996, %v995, %v990
    %v998 = vadd.s32 %v930, 4294967216
    %v999 = vlaneseq
    %v1000 = vshrl.u32 %v999, 7
    %v1001 = vsub.s32 %v998, %v1000
    %v1002 = vrot.slane %v679, %v1001
    %vm1003 = vcmask 720512
    %v1004 = vsel %vm1003, %v1002, %v997
    %v1005 = vadd.s32 %v930, 4294967208
    %v1006 = vlaneseq
    %v1007 = vshrl.u32 %v1006, 7
    %v1008 = vsub.s32 %v1005, %v1007
    %v1009 = vrot.slane %v680, %v1008
    %vm1010 = vcmask 786112
    %v1011 = vsel %vm1010, %v1009, %v1004
    %v1012 = vadd.s32 %v930, 4294967200
    %v1013 = vlaneseq
    %v1014 = vshrl.u32 %v1013, 7
    %v1015 = vsub.s32 %v1012, %v1014
    %v1016 = vrot.slane %v681, %v1015
    %vm1017 = vcmask 851712
    %v1018 = vsel %vm1017, %v1016, %v1011
    %v1019 = vadd.s32 %v930, 4294967192
    %v1020 = vlaneseq
    %v1021 = vshrl.u32 %v1020, 7
    %v1022 = vsub.s32 %v1019, %v1021
    %v1023 = vrot.slane %v682, %v1022
    %vm1024 = vcmask 917312
    %v1025 = vsel %vm1024, %v1023, %v1018
    %v1026 = vadd.s32 %v930, 4294967184
    %v1027 = vlaneseq
    %v1028 = vshrl.u32 %v1027, 7
    %v1029 = vsub.s32 %v1026, %v1028
    %v1030 = vrot.slane %v683, %v1029
    %vm1031 = vcmask 982912
    %v1032 = vsel %vm1031, %v1030, %v1025
    %v1033 = vadd.s32 %v930, 4294967176
    %v1034 = vlaneseq
    %v1035 = vshrl.u32 %v1034, 7
    %v1036 = vsub.s32 %v1033, %v1035
    %v1037 = vrot.slane %v684, %v1036
    %vm1038 = vcmask 1048512
    %v1039 = vsel %vm1038, %v1037, %v1032
    %v1040 = vlaneseq
    %v1041 = vshrl.u32 %v1040, 7
    %v1042 = vsub.s32 %v930, %v1041
    %v1043 = vrot.slane %v685, %v1042
    %v1044 = vlaneseq
    %v1045 = vshrl.u32 %v1044, 7
    %v1046 = vsub.s32 %v935, %v1045
    %v1047 = vrot.slane %v686, %v1046
    %v1048 = vsel %vm940, %v1047, %v1043
    %v1049 = vlaneseq
    %v1050 = vshrl.u32 %v1049, 7
    %v1051 = vsub.s32 %v942, %v1050
    %v1052 = vrot.slane %v687, %v1051
    %v1053 = vsel %vm947, %v1052, %v1048
    %v1054 = vlaneseq
    %v1055 = vshrl.u32 %v1054, 7
    %v1056 = vsub.s32 %v949, %v1055
    %v1057 = vrot.slane %v688, %v1056
    %v1058 = vsel %vm954, %v1057, %v1053
    %v1059 = vlaneseq
    %v1060 = vshrl.u32 %v1059, 7
    %v1061 = vsub.s32 %v956, %v1060
    %v1062 = vrot.slane %v689, %v1061
    %v1063 = vsel %vm961, %v1062, %v1058
    %v1064 = vlaneseq
    %v1065 = vshrl.u32 %v1064, 7
    %v1066 = vsub.s32 %v963, %v1065
    %v1067 = vrot.slane %v690, %v1066
    %v1068 = vsel %vm968, %v1067, %v1063
    %v1069 = vlaneseq
    %v1070 = vshrl.u32 %v1069, 7
    %v1071 = vsub.s32 %v970, %v1070
    %v1072 = vrot.slane %v691, %v1071
    %v1073 = vsel %vm975, %v1072, %v1068
    %v1074 = vlaneseq
    %v1075 = vshrl.u32 %v1074, 7
    %v1076 = vsub.s32 %v977, %v1075
    %v1077 = vrot.slane %v692, %v1076
    %v1078 = vsel %vm982, %v1077, %v1073
    %v1079 = vlaneseq
    %v1080 = vshrl.u32 %v1079, 7
    %v1081 = vsub.s32 %v984, %v1080
    %v1082 = vrot.slane %v693, %v1081
    %v1083 = vsel %vm989, %v1082, %v1078
    %v1084 = vlaneseq
    %v1085 = vshrl.u32 %v1084, 7
    %v1086 = vsub.s32 %v991, %v1085
    %v1087 = vrot.slane %v694, %v1086
    %v1088 = vsel %vm996, %v1087, %v1083
    %v1089 = vlaneseq
    %v1090 = vshrl.u32 %v1089, 7
    %v1091 = vsub.s32 %v998, %v1090
    %v1092 = vrot.slane %v695, %v1091
    %v1093 = vsel %vm1003, %v1092, %v1088
    %v1094 = vlaneseq
    %v1095 = vshrl.u32 %v1094, 7
    %v1096 = vsub.s32 %v1005, %v1095
    %v1097 = vrot.slane %v696, %v1096
    %v1098 = vsel %vm1010, %v1097, %v1093
    %v1099 = vlaneseq
    %v1100 = vshrl.u32 %v1099, 7
    %v1101 = vsub.s32 %v1012, %v1100
    %v1102 = vrot.slane %v697, %v1101
    %v1103 = vsel %vm1017, %v1102, %v1098
    %v1104 = vlaneseq
    %v1105 = vshrl.u32 %v1104, 7
    %v1106 = vsub.s32 %v1019, %v1105
    %v1107 = vrot.slane %v698, %v1106
    %v1108 = vsel %vm1024, %v1107, %v1103
    %v1109 = vlaneseq
    %v1110 = vshrl.u32 %v1109, 7
    %v1111 = vsub.s32 %v1026, %v1110
    %v1112 = vrot.slane %v699, %v1111
    %v1113 = vsel %vm1031, %v1112, %v1108
    %v1114 = vlaneseq
    %v1115 = vshrl.u32 %v1114, 7
    %v1116 = vsub.s32 %v1033, %v1115
    %v1117 = vrot.slane %v700, %v1116
    %v1118 = vsel %vm1038, %v1117, %v1113
    %v1119 = vlaneseq
    %v1120 = vshrl.u32 %v1119, 7
    %v1121 = vsub.s32 %v930, %v1120
    %v1122 = vrot.slane %v701, %v1121
    %v1123 = vlaneseq
    %v1124 = vshrl.u32 %v1123, 7
    %v1125 = vsub.s32 %v935, %v1124
    %v1126 = vrot.slane %v702, %v1125
    %v1127 = vsel %vm940, %v1126, %v1122
    %v1128 = vlaneseq
    %v1129 = vshrl.u32 %v1128, 7
    %v1130 = vsub.s32 %v942, %v1129
    %v1131 = vrot.slane %v703, %v1130
    %v1132 = vsel %vm947, %v1131, %v1127
    %v1133 = vlaneseq
    %v1134 = vshrl.u32 %v1133, 7
    %v1135 = vsub.s32 %v949, %v1134
    %v1136 = vrot.slane %v704, %v1135
    %v1137 = vsel %vm954, %v1136, %v1132
    %v1138 = vlaneseq
    %v1139 = vshrl.u32 %v1138, 7
    %v1140 = vsub.s32 %v956, %v1139
    %v1141 = vrot.slane %v705, %v1140
    %v1142 = vsel %vm961, %v1141, %v1137
    %v1143 = vlaneseq
    %v1144 = vshrl.u32 %v1143, 7
    %v1145 = vsub.s32 %v963, %v1144
    %v1146 = vrot.slane %v706, %v1145
    %v1147 = vsel %vm968, %v1146, %v1142
    %v1148 = vlaneseq
    %v1149 = vshrl.u32 %v1148, 7
    %v1150 = vsub.s32 %v970, %v1149
    %v1151 = vrot.slane %v707, %v1150
    %v1152 = vsel %vm975, %v1151, %v1147
    %v1153 = vlaneseq
    %v1154 = vshrl.u32 %v1153, 7
    %v1155 = vsub.s32 %v977, %v1154
    %v1156 = vrot.slane %v708, %v1155
    %v1157 = vsel %vm982, %v1156, %v1152
    %v1158 = vlaneseq
    %v1159 = vshrl.u32 %v1158, 7
    %v1160 = vsub.s32 %v984, %v1159
    %v1161 = vrot.slane %v709, %v1160
    %v1162 = vsel %vm989, %v1161, %v1157
    %v1163 = vlaneseq
    %v1164 = vshrl.u32 %v1163, 7
    %v1165 = vsub.s32 %v991, %v1164
    %v1166 = vrot.slane %v710, %v1165
    %v1167 = vsel %vm996, %v1166, %v1162
    %v1168 = vlaneseq
    %v1169 = vshrl.u32 %v1168, 7
    %v1170 = vsub.s32 %v998, %v1169
    %v1171 = vrot.slane %v711, %v1170
    %v1172 = vsel %vm1003, %v1171, %v1167
    %v1173 = vlaneseq
    %v1174 = vshrl.u32 %v1173, 7
    %v1175 = vsub.s32 %v1005, %v1174
    %v1176 = vrot.slane %v712, %v1175
    %v1177 = vsel %vm1010, %v1176, %v1172
    %v1178 = vlaneseq
    %v1179 = vshrl.u32 %v1178, 7
    %v1180 = vsub.s32 %v1012, %v1179
    %v1181 = vrot.slane %v713, %v1180
    %v1182 = vsel %vm1017, %v1181, %v1177
    %v1183 = vlaneseq
    %v1184 = vshrl.u32 %v1183, 7
    %v1185 = vsub.s32 %v1019, %v1184
    %v1186 = vrot.slane %v714, %v1185
    %v1187 = vsel %vm1024, %v1186, %v1182
    %v1188 = vlaneseq
    %v1189 = vshrl.u32 %v1188, 7
    %v1190 = vsub.s32 %v1026, %v1189
    %v1191 = vrot.slane %v715, %v1190
    %v1192 = vsel %vm1031, %v1191, %v1187
    %v1193 = vlaneseq
    %v1194 = vshrl.u32 %v1193, 7
    %v1195 = vsub.s32 %v1033, %v1194
    %v1196 = vrot.slane %v716, %v1195
    %v1197 = vsel %vm1038, %v1196, %v1192
    %v1198 = vlaneseq
    %v1199 = vshrl.u32 %v1198, 7
    %v1200 = vsub.s32 %v930, %v1199
    %v1201 = vrot.slane %v717, %v1200
    %v1202 = vlaneseq
    %v1203 = vshrl.u32 %v1202, 7
    %v1204 = vsub.s32 %v935, %v1203
    %v1205 = vrot.slane %v718, %v1204
    %v1206 = vsel %vm940, %v1205, %v1201
    %v1207 = vlaneseq
    %v1208 = vshrl.u32 %v1207, 7
    %v1209 = vsub.s32 %v942, %v1208
    %v1210 = vrot.slane %v719, %v1209
    %v1211 = vsel %vm947, %v1210, %v1206
    %v1212 = vlaneseq
    %v1213 = vshrl.u32 %v1212, 7
    %v1214 = vsub.s32 %v949, %v1213
    %v1215 = vrot.slane %v720, %v1214
    %v1216 = vsel %vm954, %v1215, %v1211
    %v1217 = vlaneseq
    %v1218 = vshrl.u32 %v1217, 7
    %v1219 = vsub.s32 %v956, %v1218
    %v1220 = vrot.slane %v721, %v1219
    %v1221 = vsel %vm961, %v1220, %v1216
    %v1222 = vlaneseq
    %v1223 = vshrl.u32 %v1222, 7
    %v1224 = vsub.s32 %v963, %v1223
    %v1225 = vrot.slane %v722, %v1224
    %v1226 = vsel %vm968, %v1225, %v1221
    %v1227 = vlaneseq
    %v1228 = vshrl.u32 %v1227, 7
    %v1229 = vsub.s32 %v970, %v1228
    %v1230 = vrot.slane %v723, %v1229
    %v1231 = vsel %vm975, %v1230, %v1226
    %v1232 = vlaneseq
    %v1233 = vshrl.u32 %v1232, 7
    %v1234 = vsub.s32 %v977, %v1233
    %v1235 = vrot.slane %v724, %v1234
    %v1236 = vsel %vm982, %v1235, %v1231
    %v1237 = vlaneseq
    %v1238 = vshrl.u32 %v1237, 7
    %v1239 = vsub.s32 %v984, %v1238
    %v1240 = vrot.slane %v725, %v1239
    %v1241 = vsel %vm989, %v1240, %v1236
    %v1242 = vlaneseq
    %v1243 = vshrl.u32 %v1242, 7
    %v1244 = vsub.s32 %v991, %v1243
    %v1245 = vrot.slane %v726, %v1244
    %v1246 = vsel %vm996, %v1245, %v1241
    %v1247 = vlaneseq
    %v1248 = vshrl.u32 %v1247, 7
    %v1249 = vsub.s32 %v998, %v1248
    %v1250 = vrot.slane %v727, %v1249
    %v1251 = vsel %vm1003, %v1250, %v1246
    %v1252 = vlaneseq
    %v1253 = vshrl.u32 %v1252, 7
    %v1254 = vsub.s32 %v1005, %v1253
    %v1255 = vrot.slane %v728, %v1254
    %v1256 = vsel %vm1010, %v1255, %v1251
    %v1257 = vlaneseq
    %v1258 = vshrl.u32 %v1257, 7
    %v1259 = vsub.s32 %v1012, %v1258
    %v1260 = vrot.slane %v729, %v1259
    %v1261 = vsel %vm1017, %v1260, %v1256
    %v1262 = vlaneseq
    %v1263 = vshrl.u32 %v1262, 7
    %v1264 = vsub.s32 %v1019, %v1263
    %v1265 = vrot.slane %v730, %v1264
    %v1266 = vsel %vm1024, %v1265, %v1261
    %v1267 = vlaneseq
    %v1268 = vshrl.u32 %v1267, 7
    %v1269 = vsub.s32 %v1026, %v1268
    %v1270 = vrot.slane %v731, %v1269
    %v1271 = vsel %vm1031, %v1270, %v1266
    %v1272 = vlaneseq
    %v1273 = vshrl.u32 %v1272, 7
    %v1274 = vsub.s32 %v1033, %v1273
    %v1275 = vrot.slane %v732, %v1274
    %v1276 = vsel %vm1038, %v1275, %v1271
    %v1277 = vlaneseq
    %v1278 = vshrl.u32 %v1277, 7
    %v1279 = vsub.s32 %v930, %v1278
    %v1280 = vrot.slane %v733, %v1279
    %v1281 = vlaneseq
    %v1282 = vshrl.u32 %v1281, 7
    %v1283 = vsub.s32 %v935, %v1282
    %v1284 = vrot.slane %v734, %v1283
    %v1285 = vsel %vm940, %v1284, %v1280
    %v1286 = vlaneseq
    %v1287 = vshrl.u32 %v1286, 7
    %v1288 = vsub.s32 %v942, %v1287
    %v1289 = vrot.slane %v735, %v1288
    %v1290 = vsel %vm947, %v1289, %v1285
    %v1291 = vlaneseq
    %v1292 = vshrl.u32 %v1291, 7
    %v1293 = vsub.s32 %v949, %v1292
    %v1294 = vrot.slane %v736, %v1293
    %v1295 = vsel %vm954, %v1294, %v1290
    %v1296 = vlaneseq
    %v1297 = vshrl.u32 %v1296, 7
    %v1298 = vsub.s32 %v956, %v1297
    %v1299 = vrot.slane %v737, %v1298
    %v1300 = vsel %vm961, %v1299, %v1295
    %v1301 = vlaneseq
    %v1302 = vshrl.u32 %v1301, 7
    %v1303 = vsub.s32 %v963, %v1302
    %v1304 = vrot.slane %v738, %v1303
    %v1305 = vsel %vm968, %v1304, %v1300
    %v1306 = vlaneseq
    %v1307 = vshrl.u32 %v1306, 7
    %v1308 = vsub.s32 %v970, %v1307
    %v1309 = vrot.slane %v739, %v1308
    %v1310 = vsel %vm975, %v1309, %v1305
    %v1311 = vlaneseq
    %v1312 = vshrl.u32 %v1311, 7
    %v1313 = vsub.s32 %v977, %v1312
    %v1314 = vrot.slane %v740, %v1313
    %v1315 = vsel %vm982, %v1314, %v1310
    %v1316 = vlaneseq
    %v1317 = vshrl.u32 %v1316, 7
    %v1318 = vsub.s32 %v984, %v1317
    %v1319 = vrot.slane %v741, %v1318
    %v1320 = vsel %vm989, %v1319, %v1315
    %v1321 = vlaneseq
    %v1322 = vshrl.u32 %v1321, 7
    %v1323 = vsub.s32 %v991, %v1322
    %v1324 = vrot.slane %v742, %v1323
    %v1325 = vsel %vm996, %v1324, %v1320
    %v1326 = vlaneseq
    %v1327 = vshrl.u32 %v1326, 7
    %v1328 = vsub.s32 %v998, %v1327
    %v1329 = vrot.slane %v743, %v1328
    %v1330 = vsel %vm1003, %v1329, %v1325
    %v1331 = vlaneseq
    %v1332 = vshrl.u32 %v1331, 7
    %v1333 = vsub.s32 %v1005, %v1332
    %v1334 = vrot.slane %v744, %v1333
    %v1335 = vsel %vm1010, %v1334, %v1330
    %v1336 = vlaneseq
    %v1337 = vshrl.u32 %v1336, 7
    %v1338 = vsub.s32 %v1012, %v1337
    %v1339 = vrot.slane %v745, %v1338
    %v1340 = vsel %vm1017, %v1339, %v1335
    %v1341 = vlaneseq
    %v1342 = vshrl.u32 %v1341, 7
    %v1343 = vsub.s32 %v1019, %v1342
    %v1344 = vrot.slane %v746, %v1343
    %v1345 = vsel %vm1024, %v1344, %v1340
    %v1346 = vlaneseq
    %v1347 = vshrl.u32 %v1346, 7
    %v1348 = vsub.s32 %v1026, %v1347
    %v1349 = vrot.slane %v747, %v1348
    %v1350 = vsel %vm1031, %v1349, %v1345
    %v1351 = vlaneseq
    %v1352 = vshrl.u32 %v1351, 7
    %v1353 = vsub.s32 %v1033, %v1352
    %v1354 = vrot.slane %v748, %v1353
    %v1355 = vsel %vm1038, %v1354, %v1350
    %v1356 = vlaneseq
    %v1357 = vshrl.u32 %v1356, 7
    %v1358 = vsub.s32 %v930, %v1357
    %v1359 = vrot.slane %v749, %v1358
    %v1360 = vlaneseq
    %v1361 = vshrl.u32 %v1360, 7
    %v1362 = vsub.s32 %v935, %v1361
    %v1363 = vrot.slane %v750, %v1362
    %v1364 = vsel %vm940, %v1363, %v1359
    %v1365 = vlaneseq
    %v1366 = vshrl.u32 %v1365, 7
    %v1367 = vsub.s32 %v942, %v1366
    %v1368 = vrot.slane %v751, %v1367
    %v1369 = vsel %vm947, %v1368, %v1364
    %v1370 = vlaneseq
    %v1371 = vshrl.u32 %v1370, 7
    %v1372 = vsub.s32 %v949, %v1371
    %v1373 = vrot.slane %v752, %v1372
    %v1374 = vsel %vm954, %v1373, %v1369
    %v1375 = vlaneseq
    %v1376 = vshrl.u32 %v1375, 7
    %v1377 = vsub.s32 %v956, %v1376
    %v1378 = vrot.slane %v753, %v1377
    %v1379 = vsel %vm961, %v1378, %v1374
    %v1380 = vlaneseq
    %v1381 = vshrl.u32 %v1380, 7
    %v1382 = vsub.s32 %v963, %v1381
    %v1383 = vrot.slane %v754, %v1382
    %v1384 = vsel %vm968, %v1383, %v1379
    %v1385 = vlaneseq
    %v1386 = vshrl.u32 %v1385, 7
    %v1387 = vsub.s32 %v970, %v1386
    %v1388 = vrot.slane %v755, %v1387
    %v1389 = vsel %vm975, %v1388, %v1384
    %v1390 = vlaneseq
    %v1391 = vshrl.u32 %v1390, 7
    %v1392 = vsub.s32 %v977, %v1391
    %v1393 = vrot.slane %v756, %v1392
    %v1394 = vsel %vm982, %v1393, %v1389
    %v1395 = vlaneseq
    %v1396 = vshrl.u32 %v1395, 7
    %v1397 = vsub.s32 %v984, %v1396
    %v1398 = vrot.slane %v757, %v1397
    %v1399 = vsel %vm989, %v1398, %v1394
    %v1400 = vlaneseq
    %v1401 = vshrl.u32 %v1400, 7
    %v1402 = vsub.s32 %v991, %v1401
    %v1403 = vrot.slane %v758, %v1402
    %v1404 = vsel %vm996, %v1403, %v1399
    %v1405 = vlaneseq
    %v1406 = vshrl.u32 %v1405, 7
    %v1407 = vsub.s32 %v998, %v1406
    %v1408 = vrot.slane %v759, %v1407
    %v1409 = vsel %vm1003, %v1408, %v1404
    %v1410 = vlaneseq
    %v1411 = vshrl.u32 %v1410, 7
    %v1412 = vsub.s32 %v1005, %v1411
    %v1413 = vrot.slane %v760, %v1412
    %v1414 = vsel %vm1010, %v1413, %v1409
    %v1415 = vlaneseq
    %v1416 = vshrl.u32 %v1415, 7
    %v1417 = vsub.s32 %v1012, %v1416
    %v1418 = vrot.slane %v761, %v1417
    %v1419 = vsel %vm1017, %v1418, %v1414
    %v1420 = vlaneseq
    %v1421 = vshrl.u32 %v1420, 7
    %v1422 = vsub.s32 %v1019, %v1421
    %v1423 = vrot.slane %v762, %v1422
    %v1424 = vsel %vm1024, %v1423, %v1419
    %v1425 = vlaneseq
    %v1426 = vshrl.u32 %v1425, 7
    %v1427 = vsub.s32 %v1026, %v1426
    %v1428 = vrot.slane %v763, %v1427
    %v1429 = vsel %vm1031, %v1428, %v1424
    %v1430 = vlaneseq
    %v1431 = vshrl.u32 %v1430, 7
    %v1432 = vsub.s32 %v1033, %v1431
    %v1433 = vrot.slane %v764, %v1432
    %v1434 = vsel %vm1038, %v1433, %v1429
    %v1435 = vlaneseq
    %v1436 = vshrl.u32 %v1435, 7
    %v1437 = vsub.s32 %v930, %v1436
    %v1438 = vrot.slane %v765, %v1437
    %v1439 = vlaneseq
    %v1440 = vshrl.u32 %v1439, 7
    %v1441 = vsub.s32 %v935, %v1440
    %v1442 = vrot.slane %v766, %v1441
    %v1443 = vsel %vm940, %v1442, %v1438
    %v1444 = vlaneseq
    %v1445 = vshrl.u32 %v1444, 7
    %v1446 = vsub.s32 %v942, %v1445
    %v1447 = vrot.slane %v767, %v1446
    %v1448 = vsel %vm947, %v1447, %v1443
    %v1449 = vlaneseq
    %v1450 = vshrl.u32 %v1449, 7
    %v1451 = vsub.s32 %v949, %v1450
    %v1452 = vrot.slane %v768, %v1451
    %v1453 = vsel %vm954, %v1452, %v1448
    %v1454 = vlaneseq
    %v1455 = vshrl.u32 %v1454, 7
    %v1456 = vsub.s32 %v956, %v1455
    %v1457 = vrot.slane %v769, %v1456
    %v1458 = vsel %vm961, %v1457, %v1453
    %v1459 = vlaneseq
    %v1460 = vshrl.u32 %v1459, 7
    %v1461 = vsub.s32 %v963, %v1460
    %v1462 = vrot.slane %v770, %v1461
    %v1463 = vsel %vm968, %v1462, %v1458
    %v1464 = vlaneseq
    %v1465 = vshrl.u32 %v1464, 7
    %v1466 = vsub.s32 %v970, %v1465
    %v1467 = vrot.slane %v771, %v1466
    %v1468 = vsel %vm975, %v1467, %v1463
    %v1469 = vlaneseq
    %v1470 = vshrl.u32 %v1469, 7
    %v1471 = vsub.s32 %v977, %v1470
    %v1472 = vrot.slane %v772, %v1471
    %v1473 = vsel %vm982, %v1472, %v1468
    %v1474 = vlaneseq
    %v1475 = vshrl.u32 %v1474, 7
    %v1476 = vsub.s32 %v984, %v1475
    %v1477 = vrot.slane %v773, %v1476
    %v1478 = vsel %vm989, %v1477, %v1473
    %v1479 = vlaneseq
    %v1480 = vshrl.u32 %v1479, 7
    %v1481 = vsub.s32 %v991, %v1480
    %v1482 = vrot.slane %v774, %v1481
    %v1483 = vsel %vm996, %v1482, %v1478
    %v1484 = vlaneseq
    %v1485 = vshrl.u32 %v1484, 7
    %v1486 = vsub.s32 %v998, %v1485
    %v1487 = vrot.slane %v775, %v1486
    %v1488 = vsel %vm1003, %v1487, %v1483
    %v1489 = vlaneseq
    %v1490 = vshrl.u32 %v1489, 7
    %v1491 = vsub.s32 %v1005, %v1490
    %v1492 = vrot.slane %v776, %v1491
    %v1493 = vsel %vm1010, %v1492, %v1488
    %v1494 = vlaneseq
    %v1495 = vshrl.u32 %v1494, 7
    %v1496 = vsub.s32 %v1012, %v1495
    %v1497 = vrot.slane %v777, %v1496
    %v1498 = vsel %vm1017, %v1497, %v1493
    %v1499 = vlaneseq
    %v1500 = vshrl.u32 %v1499, 7
    %v1501 = vsub.s32 %v1019, %v1500
    %v1502 = vrot.slane %v778, %v1501
    %v1503 = vsel %vm1024, %v1502, %v1498
    %v1504 = vlaneseq
    %v1505 = vshrl.u32 %v1504, 7
    %v1506 = vsub.s32 %v1026, %v1505
    %v1507 = vrot.slane %v779, %v1506
    %v1508 = vsel %vm1031, %v1507, %v1503
    %v1509 = vlaneseq
    %v1510 = vshrl.u32 %v1509, 7
    %v1511 = vsub.s32 %v1033, %v1510
    %v1512 = vrot.slane %v780, %v1511
    %v1513 = vsel %vm1038, %v1512, %v1508
    %v1514 = vlaneseq
    %v1515 = vshrl.u32 %v1514, 7
    %v1516 = vsub.s32 %v930, %v1515
    %v1517 = vrot.slane %v781, %v1516
    %v1518 = vlaneseq
    %v1519 = vshrl.u32 %v1518, 7
    %v1520 = vsub.s32 %v935, %v1519
    %v1521 = vrot.slane %v782, %v1520
    %v1522 = vsel %vm940, %v1521, %v1517
    %v1523 = vlaneseq
    %v1524 = vshrl.u32 %v1523, 7
    %v1525 = vsub.s32 %v942, %v1524
    %v1526 = vrot.slane %v783, %v1525
    %v1527 = vsel %vm947, %v1526, %v1522
    %v1528 = vlaneseq
    %v1529 = vshrl.u32 %v1528, 7
    %v1530 = vsub.s32 %v949, %v1529
    %v1531 = vrot.slane %v784, %v1530
    %v1532 = vsel %vm954, %v1531, %v1527
    %v1533 = vlaneseq
    %v1534 = vshrl.u32 %v1533, 7
    %v1535 = vsub.s32 %v956, %v1534
    %v1536 = vrot.slane %v785, %v1535
    %v1537 = vsel %vm961, %v1536, %v1532
    %v1538 = vlaneseq
    %v1539 = vshrl.u32 %v1538, 7
    %v1540 = vsub.s32 %v963, %v1539
    %v1541 = vrot.slane %v786, %v1540
    %v1542 = vsel %vm968, %v1541, %v1537
    %v1543 = vlaneseq
    %v1544 = vshrl.u32 %v1543, 7
    %v1545 = vsub.s32 %v970, %v1544
    %v1546 = vrot.slane %v787, %v1545
    %v1547 = vsel %vm975, %v1546, %v1542
    %v1548 = vlaneseq
    %v1549 = vshrl.u32 %v1548, 7
    %v1550 = vsub.s32 %v977, %v1549
    %v1551 = vrot.slane %v788, %v1550
    %v1552 = vsel %vm982, %v1551, %v1547
    %v1553 = vlaneseq
    %v1554 = vshrl.u32 %v1553, 7
    %v1555 = vsub.s32 %v984, %v1554
    %v1556 = vrot.slane %v789, %v1555
    %v1557 = vsel %vm989, %v1556, %v1552
    %v1558 = vlaneseq
    %v1559 = vshrl.u32 %v1558, 7
    %v1560 = vsub.s32 %v991, %v1559
    %v1561 = vrot.slane %v790, %v1560
    %v1562 = vsel %vm996, %v1561, %v1557
    %v1563 = vlaneseq
    %v1564 = vshrl.u32 %v1563, 7
    %v1565 = vsub.s32 %v998, %v1564
    %v1566 = vrot.slane %v791, %v1565
    %v1567 = vsel %vm1003, %v1566, %v1562
    %v1568 = vlaneseq
    %v1569 = vshrl.u32 %v1568, 7
    %v1570 = vsub.s32 %v1005, %v1569
    %v1571 = vrot.slane %v792, %v1570
    %v1572 = vsel %vm1010, %v1571, %v1567
    %v1573 = vlaneseq
    %v1574 = vshrl.u32 %v1573, 7
    %v1575 = vsub.s32 %v1012, %v1574
    %v1576 = vrot.slane %v793, %v1575
    %v1577 = vsel %vm1017, %v1576, %v1572
    %v1578 = vlaneseq
    %v1579 = vshrl.u32 %v1578, 7
    %v1580 = vsub.s32 %v1019, %v1579
    %v1581 = vrot.slane %v794, %v1580
    %v1582 = vsel %vm1024, %v1581, %v1577
    %v1583 = vlaneseq
    %v1584 = vshrl.u32 %v1583, 7
    %v1585 = vsub.s32 %v1026, %v1584
    %v1586 = vrot.slane %v795, %v1585
    %v1587 = vsel %vm1031, %v1586, %v1582
    %v1588 = vlaneseq
    %v1589 = vshrl.u32 %v1588, 7
    %v1590 = vsub.s32 %v1033, %v1589
    %v1591 = vrot.slane %v796, %v1590
    %v1592 = vsel %vm1038, %v1591, %v1587
    %vm1593 = vcmask 1041409
    %v1594 = vsel %vm1593, %v1118, %v1039
    %vm1595 = vcmask 1042434
    %v1596 = vsel %vm1595, %v1197, %v1594
    %vm1597 = vcmask 1043459
    %v1598 = vsel %vm1597, %v1276, %v1596
    %vm1599 = vcmask 1044484
    %v1600 = vsel %vm1599, %v1355, %v1598
    %vm1601 = vcmask 1045509
    %v1602 = vsel %vm1601, %v1434, %v1600
    %vm1603 = vcmask 1046534
    %v1604 = vsel %vm1603, %v1513, %v1602
    %vm1605 = vcmask 1047559
    %v1606 = vsel %vm1605, %v1592, %v1604
    %v1608 = vsel %vm800, -inf, %v1606
    %1609 = vmax.xlane.f32.xlu0 %v1608
    %v1610 = vpop.xlane.xlu0 %1609
    %v1611 = vsub.f32 %v1608, %v1610
    %v1612 = vmul.f32 %v1611, 1.442695
    %v1613 = vpow.pop %v1612
    %1614 = vadd.xlane.f32.xlu0 %v1613
    %v1615 = vpop.xlane.xlu0 %1614
    %v1616 = vrcp.pop %v1615
    %v1617 = vmul.f32 %v1613, %v1616
    %1618 = vst [vmem:[#allocation3] sm:$0xff] %v1617
    // Predicated region
    $region18: #{tpu_custom_call.1} parent=1 // pred_check
      _
    $region19: #{tpu_custom_call.1} parent=1 // pred_check_branch
      %1620 = sbr.rel (0) target = $region21
    $region20: #{tpu_custom_call.1} parent=1 // pred_region
      %s1622 = ssub.s32 128, 128
      %1623 = vsyncadd [#allocation4], %s1622
      %s1625 = sshll.u32 [#allocation3], 4
      %s1626 = int_to_ptr.vmem [resolvable:$true] %s1625
      %1628 = dma.vmem_to_hbm [thread:$0]  %s1626, 128, %s4, [#allocation4]
    $region21: #{tpu_custom_call.1} parent=1 // pred_fallthru
      _
    // Predicated region
    $region22: #{tpu_custom_call.1} parent=1 // pred_check
      _
    $region23: #{tpu_custom_call.1} parent=1 // pred_check_branch
      %1630 = sbr.rel (0) target = $region25
    $region24: #{tpu_custom_call.1} parent=1 // pred_region
      %1631 = dma.done [#allocation4], 128
    $region25: #{tpu_custom_call.1} parent=1 // pred_fallthru
      _
    %1632 = vsyncpa [#allocation4], 1

</llo_original>
